<compile_context>
chip_gen: v5e
topology: v5e:2x2
jax: 0.10.0
libtpu: 0.0.40
codegen_flags: <defaults>
</compile_context>

<pallas_src>
import jax
import jax.numpy as jnp
from jax.experimental import pallas as pl
from jax.experimental.pallas import tpu as pltpu


def posemap_kernel(x_ref, o_ref, acc_ref):
    # x_ref: (Bt, Ct, HW) input block, o_ref: (Bt, HW), acc_ref: (Bt, HW) f32
    c = pl.program_id(1)

    @pl.when(c == 0)
    def _():
        acc_ref[...] = jnp.zeros_like(acc_ref)

    # Per-channel accumulation: each slice is a sublane x lane dense (Bt, HW)
    # plane; the widening cast (bf16 -> f32) fuses into the VALU add, and no
    # whole (Bt, Ct, HW) block is ever materialized in vregs.
    for ci in range(x_ref.shape[1]):
        xc = x_ref[:, ci, :]
        if xc.dtype != jnp.float32:
            xc = xc.astype(jnp.float32)
        acc_ref[...] += xc

    @pl.when(c == pl.num_programs(1) - 1)
    def _():
        res = acc_ref[...]                              # (Bt, HW) channel sum
        div = jnp.sum(res, axis=1, keepdims=True)       # (Bt, 1) spatial mass
        inv = pl.reciprocal(div, approx=False)          # exact -> 1e-5 tol holds
        o_ref[...] = (res * inv).astype(o_ref.dtype)


def _tpu_vmem_bytes():
    try:
        return int(pltpu.get_tpu_info().vmem_capacity_bytes)
    except Exception:
        return 64 << 20   # conservative fallback (v7x per-TensorCore VMEM)


def _block_budget_bytes(phys_vmem):
    # Big enough that the ~0.35us per-grid-step cost is a few % of the block
    # DMA, small enough that 2x double-buffered inputs + output + scratch fit
    # every generation's *default* scoped VMEM without tuning:
    #   v5e/v6e (128 MiB physical)            -> 8 MiB blocks
    #   v7x     (64 MiB physical per TC)      -> 6 MiB blocks
    return (8 << 20) if phys_vmem >= (96 << 20) else (6 << 20)


def _choose_tiles(B, C, HW, itemsize, budget_bytes):
    """Pick (batch_tile, channel_tile) so one input block ~= budget_bytes.

    Partial (tiled) dims on the second-to-last block axis are kept multiples
    of 8 (or the full dim) to satisfy the TPU (8,128) block constraint, and
    channel tiles always divide C so the reduction has no masked remainder.
    """
    row_bytes = HW * itemsize
    max_unroll = 64  # bound the in-kernel per-channel unroll

    # ---- channel tile -------------------------------------------------------
    if C * row_bytes <= budget_bytes and C <= max_unroll:
        ct = C
    else:
        ct = C  # fallback: full C (vmem_limit_bytes below covers the overshoot)
        for d in range(8, C, 8):
            if C % d == 0 and d <= max_unroll and d * row_bytes <= budget_bytes:
                ct = d  # largest multiple-of-8 divisor that fits

    # ---- batch tile (cdiv grid: Bt need not divide B) -----------------------
    bt_raw = budget_bytes // (ct * row_bytes)
    if bt_raw >= B:
        bt = B                           # whole batch in one block (full dim)
    else:
        bt = max(8, (bt_raw // 8) * 8)   # partial blocks: multiple-of-8 sublanes
        if bt >= B:
            bt = B
    return bt, ct


def pose_map(x):
    assert x.ndim == 4, "The HeatMap shape should be BxCxHxW"
    B, C, H, W = x.shape
    HW = H * W
    itemsize = jnp.dtype(x.dtype).itemsize

    # Lane-dense layout: collapse spatial dims onto the 128-wide lane axis.
    x2 = x.reshape(B, C, HW)

    phys = _tpu_vmem_bytes()
    budget = _block_budget_bytes(phys)
    bt, ct = _choose_tiles(B, C, HW, itemsize, budget)
    grid = (pl.cdiv(B, bt), C // ct)

    # Only raise the scoped-VMEM limit when the estimated footprint might not
    # fit the smallest default (v5e: 16 MiB).
    in_block = bt * ct * HW * itemsize
    out_block = bt * HW * itemsize
    acc_block = bt * HW * 4
    est = 2 * in_block + 2 * out_block + acc_block + (1 << 20)
    vmem_limit = None
    if est > (12 << 20):
        vmem_limit = int(min(phys * 3 // 4, est + (8 << 20)))

    out = pl.pallas_call(
        posemap_kernel,
        out_shape=jax.ShapeDtypeStruct((B, HW), x.dtype),
        grid_spec=pltpu.PrefetchScalarGridSpec(
            num_scalar_prefetch=0,
            grid=grid,
            in_specs=[pl.BlockSpec((bt, ct, HW), lambda b, c: (b, c, 0))],
            out_specs=pl.BlockSpec((bt, HW), lambda b, c: (b, 0)),
            scratch_shapes=[pltpu.VMEM((bt, HW), jnp.float32)],
        ),
        compiler_params=pltpu.CompilerParams(
            dimension_semantics=("parallel", "arbitrary"),
            vmem_limit_bytes=vmem_limit,
        ),
    )(x2)

    return out.reshape(B, 1, H, W)


def pose_map_ref(x):
    res = jnp.sum(x, axis=1, keepdims=True)
    div = jnp.sum(res, axis=(2, 3), keepdims=True)
    return res / div


if __name__ == "__main__":
    key = jax.random.PRNGKey(0)
    # Heatmap-like positive input so the normalizer is well-defined.
    x = jax.nn.softplus(jax.random.normal(key, (2, 4, 16, 16), dtype=jnp.float32))

    out = jax.block_until_ready(pose_map(x))
    ref = pose_map_ref(x)

    assert out.shape == (2, 1, 16, 16)
    assert jnp.allclose(out, ref, atol=1e-5, rtol=1e-5)
    # each normalized map should sum to 1 over H, W
    assert jnp.allclose(jnp.sum(out, axis=(2, 3)), 1.0, atol=1e-5)

    print("KERNEL_OK")
</pallas_src>

<mosaic_0001>
module attributes {stable_mosaic.version = 11 : i64} {
  func.func @posemap_kernel(%arg0: i32, %arg1: i32, %arg2: memref<2x4x256xf32, #tpu.memory_space<vmem>>, %arg3: memref<2x256xf32, #tpu.memory_space<vmem>>, %arg4: memref<2x256xf32, #tpu.memory_space<vmem>>) attributes {dimension_semantics = [#tpu.dimension_semantics<parallel>, #tpu.dimension_semantics<arbitrary>], iteration_bounds = array<i64: 1, 1>, scalar_prefetch = 0 : i64, scratch_operands = 1 : i64, tpu.core_type = #tpu.core_type<tc>, window_params = [{transform_indices = @transform_0, window_bounds = array<i64: 2, 4, 256>}, {transform_indices = @transform_1, window_bounds = array<i64: 2, 256>}]} {
    %c0_i32 = arith.constant 0 : i32
    %0 = arith.cmpi eq, %arg1, %c0_i32 : i32
    %1 = arith.extui %0 : i1 to i32
    %c0_i32_0 = arith.constant 0 : i32
    %2 = arith.cmpi ne, %1, %c0_i32_0 : i32
    scf.if %2 {
      %cst = arith.constant 0.000000e+00 : f32
      %26 = vector.broadcast %cst : f32 to vector<2x256xf32>
      %c0_27 = arith.constant 0 : index
      %c0_28 = arith.constant 0 : index
      %27 = vector.load %arg4[%c0_27, %c0_28] : memref<2x256xf32, #tpu.memory_space<vmem>>, vector<2x256xf32>
      tpu.vector_store %arg4[%c0_27, %c0_28], %26 {strides = array<i32>} : memref<2x256xf32, #tpu.memory_space<vmem>>, vector<2x256xf32>,
    } else {
    }
    %c0 = arith.constant 0 : index
    %c0_1 = arith.constant 0 : index
    %c0_2 = arith.constant 0 : index
    %3 = vector.load %arg2[%c0, %c0_1, %c0_2] : memref<2x4x256xf32, #tpu.memory_space<vmem>>, vector<2x1x256xf32>
    %4 = vector.shape_cast %3 : vector<2x1x256xf32> to vector<2x256xf32>
    %c0_3 = arith.constant 0 : index
    %c0_4 = arith.constant 0 : index
    %5 = vector.load %arg4[%c0_3, %c0_4] : memref<2x256xf32, #tpu.memory_space<vmem>>, vector<2x256xf32>
    %6 = arith.addf %5, %4 : vector<2x256xf32>
    %c0_5 = arith.constant 0 : index
    %c0_6 = arith.constant 0 : index
    %7 = vector.load %arg4[%c0_5, %c0_6] : memref<2x256xf32, #tpu.memory_space<vmem>>, vector<2x256xf32>
    tpu.vector_store %arg4[%c0_5, %c0_6], %6 {strides = array<i32>} : memref<2x256xf32, #tpu.memory_space<vmem>>, vector<2x256xf32>,
    %c0_7 = arith.constant 0 : index
    %c1 = arith.constant 1 : index
    %c0_8 = arith.constant 0 : index
    %8 = vector.load %arg2[%c0_7, %c1, %c0_8] : memref<2x4x256xf32, #tpu.memory_space<vmem>>, vector<2x1x256xf32>
    %9 = vector.shape_cast %8 : vector<2x1x256xf32> to vector<2x256xf32>
    %c0_9 = arith.constant 0 : index
    %c0_10 = arith.constant 0 : index
    %10 = vector.load %arg4[%c0_9, %c0_10] : memref<2x256xf32, #tpu.memory_space<vmem>>, vector<2x256xf32>
    %11 = arith.addf %10, %9 : vector<2x256xf32>
    %c0_11 = arith.constant 0 : index
    %c0_12 = arith.constant 0 : index
    %12 = vector.load %arg4[%c0_11, %c0_12] : memref<2x256xf32, #tpu.memory_space<vmem>>, vector<2x256xf32>
    tpu.vector_store %arg4[%c0_11, %c0_12], %11 {strides = array<i32>} : memref<2x256xf32, #tpu.memory_space<vmem>>, vector<2x256xf32>,
    %c0_13 = arith.constant 0 : index
    %c2 = arith.constant 2 : index
    %c0_14 = arith.constant 0 : index
    %13 = vector.load %arg2[%c0_13, %c2, %c0_14] : memref<2x4x256xf32, #tpu.memory_space<vmem>>, vector<2x1x256xf32>
    %14 = vector.shape_cast %13 : vector<2x1x256xf32> to vector<2x256xf32>
    %c0_15 = arith.constant 0 : index
    %c0_16 = arith.constant 0 : index
    %15 = vector.load %arg4[%c0_15, %c0_16] : memref<2x256xf32, #tpu.memory_space<vmem>>, vector<2x256xf32>
    %16 = arith.addf %15, %14 : vector<2x256xf32>
    %c0_17 = arith.constant 0 : index
    %c0_18 = arith.constant 0 : index
    %17 = vector.load %arg4[%c0_17, %c0_18] : memref<2x256xf32, #tpu.memory_space<vmem>>, vector<2x256xf32>
    tpu.vector_store %arg4[%c0_17, %c0_18], %16 {strides = array<i32>} : memref<2x256xf32, #tpu.memory_space<vmem>>, vector<2x256xf32>,
    %c0_19 = arith.constant 0 : index
    %c3 = arith.constant 3 : index
    %c0_20 = arith.constant 0 : index
    %18 = vector.load %arg2[%c0_19, %c3, %c0_20] : memref<2x4x256xf32, #tpu.memory_space<vmem>>, vector<2x1x256xf32>
    %19 = vector.shape_cast %18 : vector<2x1x256xf32> to vector<2x256xf32>
    %c0_21 = arith.constant 0 : index
    %c0_22 = arith.constant 0 : index
    %20 = vector.load %arg4[%c0_21, %c0_22] : memref<2x256xf32, #tpu.memory_space<vmem>>, vector<2x256xf32>
    %21 = arith.addf %20, %19 : vector<2x256xf32>
    %c0_23 = arith.constant 0 : index
    %c0_24 = arith.constant 0 : index
    %22 = vector.load %arg4[%c0_23, %c0_24] : memref<2x256xf32, #tpu.memory_space<vmem>>, vector<2x256xf32>
    tpu.vector_store %arg4[%c0_23, %c0_24], %21 {strides = array<i32>} : memref<2x256xf32, #tpu.memory_space<vmem>>, vector<2x256xf32>,
    %c0_i32_25 = arith.constant 0 : i32
    %23 = arith.cmpi eq, %arg1, %c0_i32_25 : i32
    %24 = arith.extui %23 : i1 to i32
    %c0_i32_26 = arith.constant 0 : i32
    %25 = arith.cmpi ne, %24, %c0_i32_26 : i32
    scf.if %25 {
      %c0_27 = arith.constant 0 : index
      %c0_28 = arith.constant 0 : index
      %26 = vector.load %arg4[%c0_27, %c0_28] : memref<2x256xf32, #tpu.memory_space<vmem>>, vector<2x256xf32>
      %cst = arith.constant dense<0.000000e+00> : vector<2xf32>
      %27 = vector.multi_reduction <add>, %26, %cst [1] : vector<2x256xf32> to vector<2xf32>
      %28 = vector.shape_cast %27 : vector<2xf32> to vector<2x1xf32>
      %29 = tpu.reciprocal %28 : vector<2x1xf32> -> vector<2x1xf32>
      %30 = vector.broadcast %29 : vector<2x1xf32> to vector<2x256xf32>
      %31 = arith.mulf %26, %30 : vector<2x256xf32>
      %c0_29 = arith.constant 0 : index
      %c0_30 = arith.constant 0 : index
      %32 = vector.load %arg3[%c0_29, %c0_30] : memref<2x256xf32, #tpu.memory_space<vmem>>, vector<2x256xf32>
      tpu.vector_store %arg3[%c0_29, %c0_30], %31 {strides = array<i32>} : memref<2x256xf32, #tpu.memory_space<vmem>>, vector<2x256xf32>,
    } else {
    }
    return
  }
  func.func @transform_0(%arg0: i32, %arg1: i32) -> (i32, i32, i32) {
    %c0_i32 = arith.constant 0 : i32
    %c0_i32_0 = arith.constant 0 : i32
    return %arg0, %arg1, %c0_i32 : i32, i32, i32
  }
  func.func @transform_1(%arg0: i32, %arg1: i32) -> (i32, i32) {
    %c0_i32 = arith.constant 0 : i32
    %c0_i32_0 = arith.constant 0 : i32
    return %arg0, %c0_i32 : i32, i32
  }
}

</mosaic_0001>

<llo_original>
// kernel: tpu_custom_call.1
$region0: #{tpu_custom_call.1}
  #allocation0 [shape = 'u32[]', space=smem, size = 0x4, offset = 0x4, fixed_abs, tag = 'smem constant byte address 0x4 - core index']
  #allocation1 [shape = 'u32[72,128]{1,0:T(1,128)}', space=vmem, size = 0x9000, scoped, tag = 'internal scratch']
  #allocation2 [shape = 'f32[2,256]{1,0:T(2,128)}', space=vmem, size = 0x800, scoped, tag = 'scratch operand']
  %s0 = inlined_call_operand.hbm [shape: f32[2,4,256], index: 0, kind: input, shape index: {}]
  %s1 = inlined_call_operand.hbm [shape: f32[2,256], index: 1, kind: output, shape index: {}]
  %s2 = sld [smem:[#allocation0]]
  $region26: #{tpu_custom_call.1} parent=0
    _
  %s4 = ssub.s32 1, %s2
  %s5 = scalar_select 0, %s4, %s2
  $region1: #{tpu_custom_call.1} parent=0
    #allocation3 [shape = 'u8[8192]{0}', space=vmem, size = 0x2000, scoped, tag = 'input window, operand 0, single buffered']
    #allocation4 [shape = 's32[1]{0}', space=sflag, size = 0x4, scoped, tag = 'scoped memory for tpu_custom_call.1']
    #allocation5 [shape = 's32[1]{0}', space=sflag, size = 0x4, scoped, tag = 'scoped memory for tpu_custom_call.1']
    #allocation6 [shape = 'u8[2048]{0}', space=vmem, size = 0x800, scoped, tag = 'output window, operand 0, single buffered']
    %6 = vsyncpa [#allocation4], 0
    %7 = vsyncpa [#allocation5], 0
    // Predicated region
    $region2: #{tpu_custom_call.1} parent=1 // pred_check
      _
    $region3: #{tpu_custom_call.1} parent=1 // pred_check_branch
      %9 = sbr.rel (0) target = $region5
    $region4: #{tpu_custom_call.1} parent=1 // pred_region
      %11 = vsyncadd [#allocation4], 0
      %s12 = sshll.u32 %s0, 4
      %s13 = int_to_ptr.hbm [resolvable:$true] %s12
      %s14 = sshll.u32 [#allocation3], 4
      %s15 = int_to_ptr.vmem [resolvable:$true] %s14
      %20 = dma.hbm_to_vmem [thread:$0]  %s13, 256, %s15, [#allocation4], 128, 128, 8
    $region5: #{tpu_custom_call.1} parent=1 // pred_fallthru
      _
    // Predicated region
    $region6: #{tpu_custom_call.1} parent=1 // pred_check
      _
    $region7: #{tpu_custom_call.1} parent=1 // pred_check_branch
      %22 = sbr.rel (0) target = $region9
    $region8: #{tpu_custom_call.1} parent=1 // pred_region
      %24 = dma.done [#allocation4], 256
    $region9: #{tpu_custom_call.1} parent=1 // pred_fallthru
      _
    %p25 = scmp.eq.s32.totalorder 0, 0
    // Predicated region
    $region10: #{tpu_custom_call.1} parent=1 // pred_check
      %p26 = pneg %p25
    $region11: #{tpu_custom_call.1} parent=1 // pred_check_branch
      %28 = sbr.rel (%p26) target = $region13
    $region12: #{tpu_custom_call.1} parent=1 // pred_region
      %29 = vst [vmem:[#allocation2] sm:$0xf] 0.0
    $region13: #{tpu_custom_call.1} parent=1 // pred_fallthru
      _
    %v30 = vld [vmem:[#allocation3] ss:$4 sm:$0x3]
    %s31 = scalar_lea.vmem [#allocation3], 8
    %v32 = vld [vmem:[%s31] ss:$4 sm:$0x3]
    %v33 = vld [vmem:[#allocation2] sm:$0xf]
    %36 = vst [vmem:[#allocation1] ss:$2 sm:$0xff] %v30
    %s37 = scalar_lea.vmem [#allocation1], 1
    %38 = vst [vmem:[%s37] ss:$2 sm:$0xff] %v32
    %v39 = vld [vmem:[#allocation1] sm:$0xff]
    %v41 = vadd.f32 %v33, %v39
    %42 = vst [vmem:[#allocation2] sm:$0xf] %v41
    %s43 = scalar_lea.vmem [#allocation3], 1
    %v44 = vld [vmem:[%s43] ss:$4 sm:$0x3]
    %s45 = scalar_lea.vmem [#allocation3], 9
    %v46 = vld [vmem:[%s45] ss:$4 sm:$0x3]
    %v47 = vld [vmem:[#allocation2] sm:$0xf]
    %50 = vst [vmem:[#allocation1] ss:$2 sm:$0xff] %v44
    %s51 = scalar_lea.vmem [#allocation1], 1
    %52 = vst [vmem:[%s51] ss:$2 sm:$0xff] %v46
    %v53 = vld [vmem:[#allocation1] sm:$0xff]
    %v55 = vadd.f32 %v47, %v53
    %56 = vst [vmem:[#allocation2] sm:$0xf] %v55
    %s57 = scalar_lea.vmem [#allocation3], 2
    %v58 = vld [vmem:[%s57] ss:$4 sm:$0x3]
    %s59 = scalar_lea.vmem [#allocation3], 10
    %v60 = vld [vmem:[%s59] ss:$4 sm:$0x3]
    %v61 = vld [vmem:[#allocation2] sm:$0xf]
    %64 = vst [vmem:[#allocation1] ss:$2 sm:$0xff] %v58
    %s65 = scalar_lea.vmem [#allocation1], 1
    %66 = vst [vmem:[%s65] ss:$2 sm:$0xff] %v60
    %v67 = vld [vmem:[#allocation1] sm:$0xff]
    %v69 = vadd.f32 %v61, %v67
    %70 = vst [vmem:[#allocation2] sm:$0xf] %v69
    %s71 = scalar_lea.vmem [#allocation3], 3
    %v72 = vld [vmem:[%s71] ss:$4 sm:$0x3]
    %s73 = scalar_lea.vmem [#allocation3], 11
    %v74 = vld [vmem:[%s73] ss:$4 sm:$0x3]
    %v75 = vld [vmem:[#allocation2] sm:$0xf]
    %78 = vst [vmem:[#allocation1] ss:$2 sm:$0xff] %v72
    %s79 = scalar_lea.vmem [#allocation1], 1
    %80 = vst [vmem:[%s79] ss:$2 sm:$0xff] %v74
    %v81 = vld [vmem:[#allocation1] sm:$0xff]
    %v83 = vadd.f32 %v75, %v81
    %84 = vst [vmem:[#allocation2] sm:$0xf] %v83
    // Predicated region
    $region14: #{tpu_custom_call.1} parent=1 // pred_check
      %p85 = pneg %p25
    $region15: #{tpu_custom_call.1} parent=1 // pred_check_branch
      %87 = sbr.rel (%p85) target = $region17
    $region16: #{tpu_custom_call.1} parent=1 // pred_region
      %v88 = vld [vmem:[#allocation2] sm:$0xf]
      %90 = vst [vmem:[#allocation1] ss:$4 sm:$0xff] %v88
      %v91 = vld.sshfl [vmem:[#allocation1] sm:$0xff pattern:$0x73625140]
      %v92 = vld.sshfl [vmem:[#allocation1 + $0x8] sm:$0xff pattern:$0x73625140]
      %vm95 = vcmask 1041408
      %v96 = vsel %vm95, %v91, 0.0
      %v97 = vsel %vm95, %v92, 0.0
      %v98 = vadd.f32 %v96, %v97
      %99 = vadd.xlane.f32.xlu0 %v98
      %v100 = vpop.xlane.xlu0 %99
      %v101 = vrcp.pop %v100
      %v102 = vmul.f32 %v100, %v101
      %v103 = vsub.f32 1.0, %v102
      %v104 = vmul.f32 %v101, %v103
      %v105 = vadd.f32 %v101, %v104
      %vm106 = vweird.f32 %v100
      %vm107 = vweird.f32 %v101
      %vm108 = vmor %vm106, %vm107
      %v109 = vsel %vm108, %v101, %v105
      %v110 = vand.u32 2147483647, %v100
      %vm111 = vcmp.eq.f32.partialorder %v110, 8.507059e+37
      %v112 = vand.u32 %v100, 2147483648
      %v113 = vor.u32 1.1754944e-38, %v112
      %v114 = vsel %vm111, %v113, %v109
      %v117 = vunpack.c.l.s4 269488144
      %v118 = vunpack.c.0.s8 %v117
      %v119 = vperm.slane %v114, %v118
      %v121 = vmul.f32 %v88, %v119
      %122 = vst [vmem:[#allocation6] sm:$0xf] %v121
    $region17: #{tpu_custom_call.1} parent=1 // pred_fallthru
      _
    // Predicated region
    $region18: #{tpu_custom_call.1} parent=1 // pred_check
      _
    $region19: #{tpu_custom_call.1} parent=1 // pred_check_branch
      %124 = sbr.rel (0) target = $region21
    $region20: #{tpu_custom_call.1} parent=1 // pred_region
      %126 = vsyncadd [#allocation5], 0
      %s128 = sshll.u32 [#allocation6], 4
      %s129 = int_to_ptr.vmem [resolvable:$true] %s128
      %s130 = sshll.u32 %s1, 4
      %s131 = int_to_ptr.hbm [resolvable:$true] %s130
      %133 = dma.vmem_to_hbm [thread:$0]  %s129, 64, %s131, [#allocation5]
    $region21: #{tpu_custom_call.1} parent=1 // pred_fallthru
      _
    // Predicated region
    $region22: #{tpu_custom_call.1} parent=1 // pred_check
      _
    $region23: #{tpu_custom_call.1} parent=1 // pred_check_branch
      %135 = sbr.rel (0) target = $region25
    $region24: #{tpu_custom_call.1} parent=1 // pred_region
      %137 = dma.done [#allocation5], 64
    $region25: #{tpu_custom_call.1} parent=1 // pred_fallthru
      _
    %138 = vsyncpa [#allocation4], 1
    %139 = vsyncpa [#allocation5], 1

</llo_original>
